<compile_context>
chip_gen: v6e
topology: v6e:2x2x1
jax: 0.10.0
libtpu: 0.0.40
codegen_flags: <defaults>
</compile_context>

<pallas_src>
import random
from functools import lru_cache, partial

import jax
import jax.numpy as jnp
from jax.experimental import pallas as pl
from jax.experimental.pallas import tpu as pltpu


def _leaky_relu_kernel(slope_ref, x_ref, o_ref):
    x = x_ref[...]
    slope = slope_ref[0].astype(x.dtype)
    o_ref[...] = jnp.where(x >= 0, x, x * slope)


_LANE_CANDIDATES = (4096, 2048, 1024, 512, 256, 128)


@lru_cache(maxsize=1)
def _block_target_bytes():
    """Generation-aware block-size target (host-side, cached)."""
    try:
        kind = jax.devices()[0].device_kind.lower()
    except Exception:
        return 2 << 20
    if "v7" in kind:
        return 8 << 20  # 3.2 TB/s HBM + 64 MiB VMEM: bigger blocks amortize
    if "v6" in kind:
        return 4 << 20  # ~1% roofline win, free inside 128 MiB VMEM
    return 2 << 20      # v5e & unknown: 2 MiB already >99% amortized


def _pick_lane(n, sub):
    """Widest lane-dense last dim (multiple of 128) dividing n.

    Preference order: rows splittable into >=2 sublane-aligned blocks, then a
    single sublane-aligned block, then any lane that fills the sublanes, then
    the widest divisor.  Returns None iff n is not a multiple of 128.
    """
    divisors = [w for w in _LANE_CANDIDATES if n % w == 0]
    if not divisors:
        return None
    for w in divisors:  # widest first
        rows = n // w
        if rows >= 2 * sub and rows % sub == 0:
            return w
    for w in divisors:
        rows = n // w
        if rows >= sub and rows % sub == 0:
            return w
    for w in divisors:
        if n // w >= sub:
            return w
    return divisors[0]


def _pick_block_rows(rows, lane, itemsize, sub, target_bytes):
    """Rows per block: a multiple of `sub`, sized for ~target_bytes, and capped
    so the grid has >= 2 blocks (megacore sharding / pipelining) whenever the
    array is big enough.  Tiny arrays fall back to one full-array block."""
    if rows < 2 * sub:
        return rows
    target = max(sub, (target_bytes // (lane * itemsize)) // sub * sub)
    half = max(sub, (rows // 2) // sub * sub)
    return min(target, half)


def _vmem_limit(block_bytes):
    # in + out, each double-buffered, plus headroom; keeps clear of v7x's
    # 64 MiB physical VMEM while raising the default scoped limit as needed.
    return int(min(56 << 20, max(16 << 20, 4 * block_bytes + (2 << 20))))


@partial(jax.jit, static_argnames=("donate",))
def leaky_relu_pallas(x, negative_slope, donate=False):
    """Elementwise leaky_relu matching torch.nn.functional.leaky_relu."""
    orig_shape = x.shape
    dtype = x.dtype
    itemsize = dtype.itemsize
    sub = max(8, 32 // itemsize)  # sublane quantum: 8 (f32), 16 (bf16), 32 (i8)
    n = x.size
    target_bytes = _block_target_bytes()

    slope = jnp.asarray(negative_slope, dtype=jnp.float32).reshape(1)
    x_flat = x.reshape(-1)  # free (bitcast) for a contiguous input
    alias = {1: 0} if donate else {}

    lane = _pick_lane(n, sub)
    if lane is not None:
        # Aligned path: free reshape to a lane-dense 2-D slab.  The row axis
        # is tiled with a cdiv grid; a partial last block (if any) is masked
        # by Pallas, so no pad and no output slice are ever needed.
        rows = n // lane
        block_rows = _pick_block_rows(rows, lane, itemsize, sub, target_bytes)
        grid = (pl.cdiv(rows, block_rows),)
        block_bytes = block_rows * lane * itemsize

        out2d = pl.pallas_call(
            _leaky_relu_kernel,
            out_shape=jax.ShapeDtypeStruct((rows, lane), dtype),
            grid=grid,
            in_specs=[
                pl.BlockSpec(memory_space=pltpu.MemorySpace.SMEM),  # slope
                pl.BlockSpec((block_rows, lane), lambda i: (i, 0)),
            ],
            out_specs=pl.BlockSpec((block_rows, lane), lambda i: (i, 0)),
            compiler_params=pltpu.CompilerParams(
                dimension_semantics=("parallel",),
                vmem_limit_bytes=_vmem_limit(block_bytes),
            ),
            input_output_aliases=alias,
        )(slope, x_flat.reshape(rows, lane))
        return out2d.reshape(orig_shape)

    # Ragged path (n % 128 != 0): no zero-cost lane-dense reshape exists, so
    # run a 1-D blocked kernel with a cdiv grid (partial last block masked by
    # Pallas) instead of the old pad + slice (two extra full HBM passes).
    blk_quantum = sub * 128
    if n <= 2 * blk_quantum:
        block_n = n  # full-array single block (tiny input)
    else:
        target = max(blk_quantum,
                     (target_bytes // itemsize) // blk_quantum * blk_quantum)
        half = max(blk_quantum, (n // 2) // blk_quantum * blk_quantum)
        block_n = min(target, half)
    grid = (pl.cdiv(n, block_n),)
    block_bytes = block_n * itemsize

    out_flat = pl.pallas_call(
        _leaky_relu_kernel,
        out_shape=jax.ShapeDtypeStruct((n,), dtype),
        grid=grid,
        in_specs=[
            pl.BlockSpec(memory_space=pltpu.MemorySpace.SMEM),  # slope
            pl.BlockSpec((block_n,), lambda i: (i,)),
        ],
        out_specs=pl.BlockSpec((block_n,), lambda i: (i,)),
        compiler_params=pltpu.CompilerParams(
            dimension_semantics=("parallel",),
            vmem_limit_bytes=_vmem_limit(block_bytes),
        ),
        input_output_aliases=alias,
    )(slope, x_flat)
    return out_flat.reshape(orig_shape)


if __name__ == "__main__":
    # FLeakyReLU.__init__ draws negative_slope from random.random(); seed it
    # so the value is reproducible in-script.
    random.seed(0)
    negative_slope = random.random()

    key = jax.random.PRNGKey(0)
    x = jax.random.normal(key, (2, 4, 16, 16), dtype=jnp.float32)  # NCHW

    out = leaky_relu_pallas(x, negative_slope)
    out = jax.block_until_ready(out)

    ref = jnp.where(x >= 0, x, x * jnp.float32(negative_slope))
    assert out.shape == x.shape and out.dtype == x.dtype
    assert jnp.allclose(out, ref, atol=1e-6, rtol=1e-6)

    print("KERNEL_OK")
</pallas_src>

<mosaic_0001>
module attributes {stable_mosaic.version = 11 : i64} {
  func.func @_leaky_relu_kernel(%arg0: i32, %arg1: memref<1xf32, #tpu.memory_space<smem>>, %arg2: memref<8x128xf32, #tpu.memory_space<vmem>>, %arg3: memref<8x128xf32, #tpu.memory_space<vmem>>) attributes {dimension_semantics = [#tpu.dimension_semantics<parallel>], iteration_bounds = array<i64: 2>, scalar_prefetch = 0 : i64, scratch_operands = 0 : i64, tpu.core_type = #tpu.core_type<tc>, window_params = [{transform_indices = @transform_0, window_bounds = array<i64: 1>}, {transform_indices = @transform_1, window_bounds = array<i64: 8, 128>}, {transform_indices = @transform_2, window_bounds = array<i64: 8, 128>}]} {
    %c0 = arith.constant 0 : index
    %c0_0 = arith.constant 0 : index
    %0 = vector.load %arg2[%c0, %c0_0] : memref<8x128xf32, #tpu.memory_space<vmem>>, vector<8x128xf32>
    %c0_1 = arith.constant 0 : index
    %1 = memref.load %arg1[%c0_1] : memref<1xf32, #tpu.memory_space<smem>>
    %cst = arith.constant 0.000000e+00 : f32
    %2 = vector.broadcast %cst : f32 to vector<8x128xf32>
    %3 = arith.cmpf oge, %0, %2 : vector<8x128xf32>
    %4 = vector.broadcast %1 : f32 to vector<8x128xf32>
    %5 = arith.mulf %0, %4 : vector<8x128xf32>
    %6 = arith.select %3, %0, %5 : vector<8x128xi1>, vector<8x128xf32>
    %c0_2 = arith.constant 0 : index
    %c0_3 = arith.constant 0 : index
    %7 = vector.load %arg3[%c0_2, %c0_3] : memref<8x128xf32, #tpu.memory_space<vmem>>, vector<8x128xf32>
    tpu.vector_store %arg3[%c0_2, %c0_3], %6 {strides = array<i32>} : memref<8x128xf32, #tpu.memory_space<vmem>>, vector<8x128xf32>,
    return
  }
  func.func @transform_0(%arg0: i32) -> i32 {
    %c0_i32 = arith.constant 0 : i32
    %c0_i32_0 = arith.constant 0 : i32
    return %c0_i32 : i32
  }
  func.func @transform_1(%arg0: i32) -> (i32, i32) {
    %c0_i32 = arith.constant 0 : i32
    %c0_i32_0 = arith.constant 0 : i32
    return %arg0, %c0_i32 : i32, i32
  }
  func.func @transform_2(%arg0: i32) -> (i32, i32) {
    %c0_i32 = arith.constant 0 : i32
    %c0_i32_0 = arith.constant 0 : i32
    return %arg0, %c0_i32 : i32, i32
  }
}

</mosaic_0001>

<llo_original>
// kernel: leaky_relu_pallas.1
$region0: #{leaky_relu_pallas.1}
  #allocation0 [shape = 'u32[]', space=smem, size = 0x4, offset = 0x4, fixed_abs, tag = 'smem constant byte address 0x4 - core index']
  #allocation1 [shape = 'u32[144,128]{1,0:T(1,128)}', space=vmem, size = 0x12000, scoped, tag = 'internal scratch']
  #allocation2 [shape = 'f32[1]{0:T(128)S(6)}', space=smem, size = 0x200, scoped, tag = 'scoped memory for leaky_relu_pallas.1']
  %s0 = inlined_call_operand.<no memory space> [shape: f32[1], index: 0, kind: input, shape index: {}]
  %s1 = inlined_call_operand.vmem [shape: f32[16,128], index: 1, kind: input, shape index: {}]
  %s2 = inlined_call_operand.vmem [shape: f32[16,128], index: 2, kind: output, shape index: {}]
  %s3 = sld [smem:[#allocation0]]
  $region41: #{leaky_relu_pallas.1} parent=0
    _
  %s5 = ssub.s32 1, %s3
  %s6 = scalar_select 0, %s5, %s3
  %7 = sst [smem:[#allocation2]] %s0
  loop: start=0, step=1, limit=4
  $region2: #{leaky_relu_pallas.1} parent=0 // loop_pre_header
    _
  $region3: #{leaky_relu_pallas.1} parent=0 // loop_header
    %s9 = sphi 0, %s13
    %p10 = scmp.ge.s32.totalorder %s9, 4
    %s17 = sphi 0, %s17
    %s19 = sphi 0, %s17
    %s20 = sphi 0, %s19
    %s34 = sphi 0, %s20
    %s40 = sphi 0, %s42
    %s43 = sphi 0, %s40
    %s44 = sphi 0, %s43
    %s60 = sphi 0, %s44
    %s66 = sphi 0, %s68
    %s69 = sphi 0, %s66
    %s70 = sphi 0, %s69
    %s86 = sphi 0, %s70
  $region4: #{leaky_relu_pallas.1} parent=0 // loop_header_branch
    %12 = sbr.rel (%p10) target = $region8
  $region5: #{leaky_relu_pallas.1} parent=0 // loop_body
    %s14 = ssub.s32 %s9, 1
    %s15 = ssub.s32 %s9, 2
    %s16 = sadd.s32 %s9, 1
    %s18 = sadd.s32 %s17, 1
    %p21 = scmp.eq.s32.totalorder %s9, 1
    %p22 = scmp.ne.s32.totalorder %s17, %s19
    %p23 = scmp.eq.s32.totalorder %s9, 0
    %p24 = por %p22, %p23
    %p25 = scmp.ne.s32.totalorder %s17, %s19
    %p26 = scmp.eq.s32.totalorder %s14, 1
    %p27 = por %p25, %p26
    %p28 = scmp.ne.s32.totalorder %s19, %s20
    %p29 = scmp.eq.s32.totalorder %s14, 0
    %p30 = por %p28, %p29
    %p31 = scmp.ne.s32.totalorder %s19, %s20
    %p32 = scmp.eq.s32.totalorder %s15, 1
    %p33 = por %p31, %p32
    %p35 = scmp.ne.s32.totalorder %s20, %s34
    %p36 = scmp.eq.s32.totalorder %s15, 0
    %p37 = por %p35, %p36
    %s38 = ssub.s32 %s9, %s16
    %p39 = scmp.eq.s32.totalorder %s38, 0
    %s41 = sadd.s32 %s40, 1
    %s42 = scalar_select %p39, %s40, %s41
    %p45 = pneg %p39
    %p46 = scmp.eq.s32.totalorder %s9, 1
    %p47 = por %p45, %p46
    %p48 = scmp.ne.s32.totalorder %s40, %s43
    %p49 = scmp.eq.s32.totalorder %s9, 0
    %p50 = por %p48, %p49
    %p51 = scmp.ne.s32.totalorder %s40, %s43
    %p52 = scmp.eq.s32.totalorder %s14, 1
    %p53 = por %p51, %p52
    %p54 = scmp.ne.s32.totalorder %s43, %s44
    %p55 = scmp.eq.s32.totalorder %s14, 0
    %p56 = por %p54, %p55
    %p57 = scmp.ne.s32.totalorder %s43, %s44
    %p58 = scmp.eq.s32.totalorder %s15, 1
    %p59 = por %p57, %p58
    %p61 = scmp.ne.s32.totalorder %s44, %s60
    %p62 = scmp.eq.s32.totalorder %s15, 0
    %p63 = por %p61, %p62
    %s64 = ssub.s32 %s9, %s16
    %p65 = scmp.eq.s32.totalorder %s64, 0
    %s67 = sadd.s32 %s66, 1
    %s68 = scalar_select %p65, %s66, %s67
    %p71 = pneg %p65
    %p72 = scmp.eq.s32.totalorder %s9, 1
    %p73 = por %p71, %p72
    %p74 = scmp.ne.s32.totalorder %s66, %s69
    %p75 = scmp.eq.s32.totalorder %s9, 0
    %p76 = por %p74, %p75
    %p77 = scmp.ne.s32.totalorder %s66, %s69
    %p78 = scmp.eq.s32.totalorder %s14, 1
    %p79 = por %p77, %p78
    %p80 = scmp.ne.s32.totalorder %s69, %s70
    %p81 = scmp.eq.s32.totalorder %s14, 0
    %p82 = por %p80, %p81
    %p83 = scmp.ne.s32.totalorder %s69, %s70
    %p84 = scmp.eq.s32.totalorder %s15, 1
    %p85 = por %p83, %p84
    %p87 = scmp.ne.s32.totalorder %s70, %s86
    %p88 = scmp.eq.s32.totalorder %s15, 0
    %p89 = por %p87, %p88
    %p90 = scmp.le.s32.totalorder 1, %s9
    %p91 = scmp.lt.s32.totalorder %s9, 3
    %p92 = pnand %p90, %p91
    %p93 = pneg %p92
    // Predicated region
    $region9: #{leaky_relu_pallas.1} parent=5 // pred_check
      _
    $region10: #{leaky_relu_pallas.1} parent=5 // pred_check_branch
      %95 = sbr.rel (%p92) target = $region12
    $region11: #{leaky_relu_pallas.1} parent=5 // pred_region
      %s96 = ssub.s32 %s9, 1
      // Predicated region
      $region13: #{leaky_relu_pallas.1} parent=11 // pred_check
        %p97 = pneg %p30
      $region14: #{leaky_relu_pallas.1} parent=11 // pred_check_branch
        %99 = sbr.rel (%p97) target = $region16
      $region15: #{leaky_relu_pallas.1} parent=11 // pred_region
        _
      $region16: #{leaky_relu_pallas.1} parent=11 // pred_fallthru
        _
    $region12: #{leaky_relu_pallas.1} parent=5 // pred_fallthru
      _
    %p100 = scmp.lt.s32.totalorder %s9, 2
    // Predicated region
    $region17: #{leaky_relu_pallas.1} parent=5 // pred_check
      %p101 = pneg %p100
    $region18: #{leaky_relu_pallas.1} parent=5 // pred_check_branch
      %103 = sbr.rel (%p101) target = $region20
    $region19: #{leaky_relu_pallas.1} parent=5 // pred_region
      // Predicated region
      $region21: #{leaky_relu_pallas.1} parent=19 // pred_check
        %p104 = pneg %p50
      $region22: #{leaky_relu_pallas.1} parent=19 // pred_check_branch
        %106 = sbr.rel (%p104) target = $region24
      $region23: #{leaky_relu_pallas.1} parent=19 // pred_region
        %p107 = scmp.lt.s32.totalorder %s9, 1
        %s108 = scalar_select %p107, %s9, 1
        %s109 = smul.addr %s108, 8
        %s110 = scalar_lea.vmem %s1, %s109
      $region24: #{leaky_relu_pallas.1} parent=19 // pred_fallthru
        _
    $region20: #{leaky_relu_pallas.1} parent=5 // pred_fallthru
      _
    %p111 = scmp.le.s32.totalorder 1, %s9
    %p112 = scmp.lt.s32.totalorder %s9, 3
    %p113 = pnand %p111, %p112
    %p114 = pneg %p113
    // Predicated region
    $region25: #{leaky_relu_pallas.1} parent=5 // pred_check
      _
    $region26: #{leaky_relu_pallas.1} parent=5 // pred_check_branch
      %116 = sbr.rel (%p113) target = $region28
    $region27: #{leaky_relu_pallas.1} parent=5 // pred_region
      %s117 = ssub.s32 %s9, 1
      %p118 = pneg %p30
      %p119 = pneg %p27
      %p120 = scmp.lt.s32.totalorder %s14, 1
      %s121 = scalar_select %p120, %s14, 1
      %s122 = smul.addr %s121, 8
      %s123 = scalar_lea.vmem %s1, %s122
      %p124 = pneg %p56
      %p125 = pneg %p53
      %p126 = pneg %p82
      %p127 = pneg %p79
      %p128 = scmp.lt.s32.totalorder %s14, 1
      %s129 = scalar_select %p128, %s14, 1
      %s130 = smul.addr %s129, 8
      %s131 = scalar_lea.vmem %s2, %s130
      %p132 = scmp.lt.s32.totalorder %s14, 1
      %s133 = scalar_select %p132, %s14, 1
      %s134 = smul.addr %s133, 8
      %s135 = scalar_lea.vmem %s1, %s134
      %p136 = scmp.lt.s32.totalorder %s14, 1
      %s137 = scalar_select %p136, %s14, 1
      %s138 = smul.addr %s137, 8
      %s139 = scalar_lea.vmem %s2, %s138
      %v140 = vld [vmem:[%s135] sm:$0xff]
      %s141 = sld [smem:[#allocation2]]
      %vm142 = vcmp.ge.f32.partialorder %v140, 0.0
      %v143 = vstv %s141
      %v144 = vmul.f32 %v140, %v143
      %v145 = vsel %vm142, %v140, %v144
      %146 = vst [vmem:[%s139] sm:$0xff] %v145
      %p147 = scmp.lt.s32.totalorder %s14, 1
      %s148 = scalar_select %p147, %s14, 1
      %s149 = smul.addr %s148, 8
      %s150 = scalar_lea.vmem %s2, %s149
      // Predicated region
      $region29: #{leaky_relu_pallas.1} parent=27 // pred_check
        %p151 = pneg %p79
      $region30: #{leaky_relu_pallas.1} parent=27 // pred_check_branch
        %153 = sbr.rel (%p151) target = $region32
      $region31: #{leaky_relu_pallas.1} parent=27 // pred_region
        _
      $region32: #{leaky_relu_pallas.1} parent=27 // pred_fallthru
        _
    $region28: #{leaky_relu_pallas.1} parent=5 // pred_fallthru
      _
    %p154 = scmp.le.s32.totalorder 2, %s9
    // Predicated region
    $region33: #{leaky_relu_pallas.1} parent=5 // pred_check
      %p155 = pneg %p154
    $region34: #{leaky_relu_pallas.1} parent=5 // pred_check_branch
      %157 = sbr.rel (%p155) target = $region36
    $region35: #{leaky_relu_pallas.1} parent=5 // pred_region
      %s158 = ssub.s32 %s9, 2
      // Predicated region
      $region37: #{leaky_relu_pallas.1} parent=35 // pred_check
        %p159 = pneg %p85
      $region38: #{leaky_relu_pallas.1} parent=35 // pred_check_branch
        %161 = sbr.rel (%p159) target = $region40
      $region39: #{leaky_relu_pallas.1} parent=35 // pred_region
        %p162 = scmp.lt.s32.totalorder %s15, 1
        %s163 = scalar_select %p162, %s15, 1
        %s164 = smul.addr %s163, 8
        %s165 = scalar_lea.vmem %s2, %s164
      $region40: #{leaky_relu_pallas.1} parent=35 // pred_fallthru
        _
    $region36: #{leaky_relu_pallas.1} parent=5 // pred_fallthru
      _
  $region6: #{leaky_relu_pallas.1} parent=0 // loop_footer
    %s13 = sadd.s32 1, %s9
  $region7: #{leaky_relu_pallas.1} parent=0 // loop_footer_branch
    %8 = sbr.rel target = $region3
  $region8: #{leaky_relu_pallas.1} parent=0 // loop_exit
    _

</llo_original>
